<compile_context>
chip_gen: v5e
topology: v5e:2x2
jax: 0.10.0
libtpu: 0.0.40
codegen_flags: <defaults>
</compile_context>

<pallas_src>
import math

import jax
import jax.numpy as jnp
from jax import lax
from jax.experimental import pallas as pl
from jax.experimental.pallas import tpu as pltpu


def _gelu_exact(x):
    # torch.nn.functional.gelu default: 0.5 * x * (1 + erf(x / sqrt(2)))
    return 0.5 * x * (1.0 + lax.erf(x * (1.0 / math.sqrt(2.0))))


def _vmem_estimate_bytes(batch, dim, num_layers, tn, w_itemsize):
    act = 2 * batch * dim * 2                 # bf16 ping-pong activation scratch
    x_res = 2 * batch * dim * 4               # resident f32 input (double-buffered)
    w = 2 * dim * tn * w_itemsize             # double-buffered weight column tile
    bias = 2 * num_layers * dim * 4           # resident f32 bias
    out = 2 * batch * tn * 4                  # double-buffered output tile
    return act + x_res + w + bias + out


def _pick_tn(batch, dim, num_layers, w_itemsize, budget_bytes=48 * 1024 * 1024):
    """Widest lane-aligned column tile that keeps the VMEM estimate in budget.

    Wider tiles => fewer grid steps (~0.35 us each), larger weight DMAs, wider
    lane-dense output stores.  The 48 MiB budget is conservative enough for
    v7x's 64 MiB physical VMEM; v5e/v6e simply benefit from the wide tiles.
    """
    candidates = [t for t in (2048, 1024, 512, 256, 128) if dim % t == 0]
    if not candidates:
        return dim  # small / odd dim: single tile (block == full array is legal)
    for tn in candidates:
        if _vmem_estimate_bytes(batch, dim, num_layers, tn, w_itemsize) <= budget_bytes:
            return tn
    return candidates[-1]


def prepare_mlp_params(weights, biases, weight_dtype=jnp.bfloat16):
    """One-time parameter prep (call at load time, NOT per forward pass).

    weights: [L, dim_out, dim_in]  (torch nn.Linear convention)
    biases:  [L, dim_out]
    Returns weights in kernel layout [L, dim_in, dim_out] cast to weight_dtype,
    and f32 biases.
    """
    w_t = jnp.transpose(weights, (0, 2, 1)).astype(weight_dtype)
    return w_t, biases.astype(jnp.float32)


def mlp_pallas(x, w_t, b):
    """x: [B, D] float32; w_t: [L, D_in, D_out] (bf16); b: [L, D] f32."""
    num_layers, dim, dim_out = w_t.shape
    assert dim == dim_out, "square layers expected"
    batch = x.shape[0]
    if x.dtype != jnp.float32:
        x = x.astype(jnp.float32)

    w_itemsize = jnp.dtype(w_t.dtype).itemsize
    tn = _pick_tn(batch, dim, num_layers, w_itemsize)
    assert dim % tn == 0
    n_tiles = dim // tn
    last = num_layers - 1
    aligned = (tn % 128 == 0)

    def kernel(x_ref, w_ref, b_ref, o_ref, act_ref):
        layer = pl.program_id(0)
        n = pl.program_id(1)

        # One-time: x was already prefetched into VMEM by Pallas (constant
        # block index), so this is just a VMEM->VMEM cast, not an exposed
        # HBM read.
        @pl.when(jnp.logical_and(layer == 0, n == 0))
        def _():
            act_ref[0] = x_ref[...].astype(jnp.bfloat16)

        src = layer % 2
        dst = (layer + 1) % 2

        start = n * tn
        if aligned:
            start = pl.multiple_of(start, 128)

        w = w_ref[0]                                      # (dim, tn), bf16
        a = act_ref[src]                                  # (batch, dim), bf16 (no cast)
        bias = b_ref[pl.ds(layer, 1), pl.ds(start, tn)]   # (1, tn), f32, resident

        y = jnp.dot(a, w, preferred_element_type=jnp.float32) + bias
        g = _gelu_exact(y)                                # (batch, tn), f32

        @pl.when(layer < last)
        def _():
            act_ref[dst, :, pl.ds(start, tn)] = g.astype(jnp.bfloat16)

        @pl.when(layer == last)
        def _():
            # Lane-dense f32 store; the only writeback of this output tile.
            o_ref[...] = g.astype(o_ref.dtype)

    est = _vmem_estimate_bytes(batch, dim, num_layers, tn, w_itemsize)
    vmem_limit = int(min(128 * 1024 * 1024, max(32 * 1024 * 1024, (est * 13) // 10)))

    cost = pl.CostEstimate(
        flops=2 * num_layers * batch * dim * dim,
        transcendentals=num_layers * batch * dim,
        bytes_accessed=(num_layers * dim * dim * w_itemsize   # weights (dominant)
                        + num_layers * dim * 4                # bias
                        + 2 * batch * dim * 4),               # x in + out
    )

    return pl.pallas_call(
        kernel,
        out_shape=jax.ShapeDtypeStruct((batch, dim), x.dtype),
        grid_spec=pltpu.PrefetchScalarGridSpec(
            num_scalar_prefetch=0,
            grid=(num_layers, n_tiles),
            in_specs=[
                # x: full block, constant index -> fetched once, prefetched
                # before the grid starts (hidden behind pipeline startup).
                pl.BlockSpec((batch, dim), lambda l, n: (0, 0)),
                # per-layer weight column tile, streamed & double-buffered.
                pl.BlockSpec((1, dim, tn), lambda l, n: (l, 0, n)),
                # bias: fully resident (tiny), sliced in-kernel.
                pl.BlockSpec((num_layers, dim), lambda l, n: (0, 0)),
            ],
            # Output block index only advances on the last layer -> exactly one
            # HBM writeback per column tile (accumulator pattern); the buffer
            # is always fully written at (last, n) before its index changes.
            out_specs=pl.BlockSpec(
                (batch, tn), lambda l, n: (0, jnp.where(l == last, n, 0))),
            scratch_shapes=[
                pltpu.VMEM((2, batch, dim), jnp.bfloat16),  # activation ping-pong
            ],
        ),
        compiler_params=pltpu.CompilerParams(
            # Scratch carries state across both axes -> neither may be parallel.
            dimension_semantics=("arbitrary", "arbitrary"),
            vmem_limit_bytes=vmem_limit,
        ),
        cost_estimate=cost,
    )(x, w_t, b)


def mlp_reference(x, w_t, b):
    """Pure-JAX reference in the same layout as the kernel ([L, in, out] weights)."""
    act = x.astype(jnp.float32)
    for l in range(w_t.shape[0]):
        y = jnp.dot(act.astype(w_t.dtype), w_t[l],
                    preferred_element_type=jnp.float32) + b[l].astype(jnp.float32)
        act = _gelu_exact(y)
    return act.astype(x.dtype)


if __name__ == "__main__":
    batch, dim, num_layers = 8, 128, 3

    key = jax.random.PRNGKey(0)
    kx, kw, kb = jax.random.split(key, 3)

    x = jax.random.normal(kx, (batch, dim), dtype=jnp.float32)
    # Deterministic init matching nn.Linear shapes: weight (dim, dim), bias (dim,)
    bound = 1.0 / math.sqrt(dim)
    weights = jax.random.uniform(
        kw, (num_layers, dim, dim), minval=-bound, maxval=bound, dtype=jnp.float32)
    biases = jax.random.uniform(
        kb, (num_layers, dim), minval=-bound, maxval=bound, dtype=jnp.float32)

    # One-time parameter prep (outside the per-call forward path).
    w_t, b = prepare_mlp_params(weights, biases, weight_dtype=jnp.bfloat16)

    out = mlp_pallas(x, w_t, b)
    out = jax.block_until_ready(out)

    # Reference with the same bf16 weight/activation quantization as the kernel.
    ref_q = mlp_reference(x, w_t, b)
    # Exact-f32 reference (bf16 weight/activation quantization is the only difference).
    ref_f32 = mlp_reference(x, jnp.transpose(weights, (0, 2, 1)), biases)

    assert out.shape == (batch, dim)
    assert jnp.allclose(out, ref_q, atol=1e-4, rtol=1e-4), "mismatch vs bf16-matched reference"
    assert jnp.allclose(out, ref_f32, atol=3e-2, rtol=3e-2), "mismatch vs exact f32 reference"

    print("KERNEL_OK")
</pallas_src>

<mosaic_0001>
module attributes {stable_mosaic.version = 11 : i64} {
  func.func @kernel(%arg0: i32, %arg1: i32, %arg2: memref<8x128xf32, #tpu.memory_space<vmem>>, %arg3: memref<1x128x128xbf16, #tpu.memory_space<vmem>>, %arg4: memref<3x128xf32, #tpu.memory_space<vmem>>, %arg5: memref<8x128xf32, #tpu.memory_space<vmem>>, %arg6: memref<2x8x128xbf16, #tpu.memory_space<vmem>>) attributes {dimension_semantics = [#tpu.dimension_semantics<arbitrary>, #tpu.dimension_semantics<arbitrary>], iteration_bounds = array<i64: 3, 1>, scalar_prefetch = 0 : i64, scratch_operands = 1 : i64, tpu.core_type = #tpu.core_type<tc>, window_params = [{pipeline_mode = #tpu.pipeline_mode<synchronous>, transform_indices = @transform_0, window_bounds = array<i64: 8, 128>}, {transform_indices = @transform_1, window_bounds = array<i64: 1, 128, 128>}, {pipeline_mode = #tpu.pipeline_mode<synchronous>, transform_indices = @transform_2, window_bounds = array<i64: 3, 128>}, {transform_indices = @transform_3, window_bounds = array<i64: 8, 128>}]} {
    %c0_i32 = arith.constant 0 : i32
    %0 = arith.cmpi eq, %arg0, %c0_i32 : i32
    %c0_i32_0 = arith.constant 0 : i32
    %1 = arith.cmpi eq, %arg1, %c0_i32_0 : i32
    %2 = arith.andi %0, %1 : i1
    %3 = arith.extui %2 : i1 to i32
    %c0_i32_1 = arith.constant 0 : i32
    %4 = arith.cmpi ne, %3, %c0_i32_1 : i32
    scf.if %4 {
      %c0_24 = arith.constant 0 : index
      %c0_25 = arith.constant 0 : index
      %53 = vector.load %arg2[%c0_24, %c0_25] : memref<8x128xf32, #tpu.memory_space<vmem>>, vector<8x128xf32>
      %54 = arith.truncf %53 : vector<8x128xf32> to vector<8x128xbf16>
      %c0_26 = arith.constant 0 : index
      %c0_27 = arith.constant 0 : index
      %c0_28 = arith.constant 0 : index
      %55 = vector.load %arg6[%c0_26, %c0_27, %c0_28] : memref<2x8x128xbf16, #tpu.memory_space<vmem>>, vector<1x8x128xbf16>
      %56 = vector.shape_cast %55 : vector<1x8x128xbf16> to vector<8x128xbf16>
      %57 = vector.shape_cast %54 : vector<8x128xbf16> to vector<1x8x128xbf16>
      tpu.vector_store %arg6[%c0_26, %c0_27, %c0_28], %57 {strides = array<i32>} : memref<2x8x128xbf16, #tpu.memory_space<vmem>>, vector<1x8x128xbf16>,
    } else {
    }
    %c2_i32 = arith.constant 2 : i32
    %c0_i32_2 = arith.constant 0 : i32
    %5 = arith.cmpi eq, %c2_i32, %c0_i32_2 : i32
    %c1_i32 = arith.constant 1 : i32
    %6 = arith.select %5, %c1_i32, %c2_i32 : i32
    %7 = arith.remsi %arg0, %6 : i32
    %c0_i32_3 = arith.constant 0 : i32
    %8 = arith.cmpi ne, %7, %c0_i32_3 : i32
    %c0_i32_4 = arith.constant 0 : i32
    %9 = arith.cmpi slt, %7, %c0_i32_4 : i32
    %c0_i32_5 = arith.constant 0 : i32
    %10 = arith.cmpi slt, %6, %c0_i32_5 : i32
    %11 = arith.xori %9, %10 : i1
    %12 = arith.andi %11, %8 : i1
    %13 = arith.addi %7, %6 : i32
    %14 = arith.select %12, %13, %7 : i32
    %c1_i32_6 = arith.constant 1 : i32
    %15 = arith.addi %arg0, %c1_i32_6 : i32
    %c2_i32_7 = arith.constant 2 : i32
    %c0_i32_8 = arith.constant 0 : i32
    %16 = arith.cmpi eq, %c2_i32_7, %c0_i32_8 : i32
    %c1_i32_9 = arith.constant 1 : i32
    %17 = arith.select %16, %c1_i32_9, %c2_i32_7 : i32
    %18 = arith.remsi %15, %17 : i32
    %c0_i32_10 = arith.constant 0 : i32
    %19 = arith.cmpi ne, %18, %c0_i32_10 : i32
    %c0_i32_11 = arith.constant 0 : i32
    %20 = arith.cmpi slt, %18, %c0_i32_11 : i32
    %c0_i32_12 = arith.constant 0 : i32
    %21 = arith.cmpi slt, %17, %c0_i32_12 : i32
    %22 = arith.xori %20, %21 : i1
    %23 = arith.andi %22, %19 : i1
    %24 = arith.addi %18, %17 : i32
    %25 = arith.select %23, %24, %18 : i32
    %c128_i32 = arith.constant 128 : i32
    %26 = arith.muli %arg1, %c128_i32 : i32
    %27 = tpu.assume_multiple %26, 128 : i32
    %c0 = arith.constant 0 : index
    %c0_13 = arith.constant 0 : index
    %c0_14 = arith.constant 0 : index
    %28 = vector.load %arg3[%c0, %c0_13, %c0_14] : memref<1x128x128xbf16, #tpu.memory_space<vmem>>, vector<1x128x128xbf16>
    %29 = vector.shape_cast %28 : vector<1x128x128xbf16> to vector<128x128xbf16>
    %30 = arith.index_cast %14 : i32 to index
    %c0_15 = arith.constant 0 : index
    %c0_16 = arith.constant 0 : index
    %31 = vector.load %arg6[%30, %c0_15, %c0_16] : memref<2x8x128xbf16, #tpu.memory_space<vmem>>, vector<1x8x128xbf16>
    %32 = vector.shape_cast %31 : vector<1x8x128xbf16> to vector<8x128xbf16>
    %33 = arith.index_cast %arg0 : i32 to index
    %34 = arith.index_cast %27 : i32 to index
    %35 = vector.load %arg4[%33, %34] : memref<3x128xf32, #tpu.memory_space<vmem>>, vector<1x128xf32>
    %cst = arith.constant dense<0.000000e+00> : vector<8x128xf32>
    %36 = tpu.matmul %32, %29, %cst {dimension_numbers = #tpu.dot_dimension_numbers<[1], [0], [0], [1], [0, 0, 1, 1], [], []>} : vector<8x128xbf16>, vector<128x128xbf16>, vector<8x128xf32> -> vector<8x128xf32>
    %37 = vector.broadcast %35 : vector<1x128xf32> to vector<8x128xf32>
    %38 = arith.addf %36, %37 : vector<8x128xf32>
    %cst_17 = arith.constant 5.000000e-01 : f32
    %39 = vector.broadcast %cst_17 : f32 to vector<8x128xf32>
    %40 = arith.mulf %39, %38 : vector<8x128xf32>
    %cst_18 = arith.constant 0.707106769 : f32
    %41 = vector.broadcast %cst_18 : f32 to vector<8x128xf32>
    %42 = arith.mulf %38, %41 : vector<8x128xf32>
    %43 = math.erf %42 : vector<8x128xf32>
    %cst_19 = arith.constant 1.000000e+00 : f32
    %44 = vector.broadcast %cst_19 : f32 to vector<8x128xf32>
    %45 = arith.addf %44, %43 : vector<8x128xf32>
    %46 = arith.mulf %40, %45 : vector<8x128xf32>
    %c2_i32_20 = arith.constant 2 : i32
    %47 = arith.cmpi slt, %arg0, %c2_i32_20 : i32
    %48 = arith.extui %47 : i1 to i32
    %c0_i32_21 = arith.constant 0 : i32
    %49 = arith.cmpi ne, %48, %c0_i32_21 : i32
    scf.if %49 {
      %53 = arith.truncf %46 : vector<8x128xf32> to vector<8x128xbf16>
      %54 = arith.index_cast %25 : i32 to index
      %c0_24 = arith.constant 0 : index
      %55 = arith.index_cast %27 : i32 to index
      %56 = vector.load %arg6[%54, %c0_24, %55] : memref<2x8x128xbf16, #tpu.memory_space<vmem>>, vector<1x8x128xbf16>
      %57 = vector.shape_cast %56 : vector<1x8x128xbf16> to vector<8x128xbf16>
      %58 = vector.shape_cast %53 : vector<8x128xbf16> to vector<1x8x128xbf16>
      tpu.vector_store %arg6[%54, %c0_24, %55], %58 {strides = array<i32>} : memref<2x8x128xbf16, #tpu.memory_space<vmem>>, vector<1x8x128xbf16>,
    } else {
    }
    %c2_i32_22 = arith.constant 2 : i32
    %50 = arith.cmpi eq, %arg0, %c2_i32_22 : i32
    %51 = arith.extui %50 : i1 to i32
    %c0_i32_23 = arith.constant 0 : i32
    %52 = arith.cmpi ne, %51, %c0_i32_23 : i32
    scf.if %52 {
      %c0_24 = arith.constant 0 : index
      %c0_25 = arith.constant 0 : index
      %53 = vector.load %arg5[%c0_24, %c0_25] : memref<8x128xf32, #tpu.memory_space<vmem>>, vector<8x128xf32>
      tpu.vector_store %arg5[%c0_24, %c0_25], %46 {strides = array<i32>} : memref<8x128xf32, #tpu.memory_space<vmem>>, vector<8x128xf32>,
    } else {
    }
    return
  }
  func.func @transform_0(%arg0: i32, %arg1: i32) -> (i32, i32) {
    %c0_i32 = arith.constant 0 : i32
    %c0_i32_0 = arith.constant 0 : i32
    %c0_i32_1 = arith.constant 0 : i32
    return %c0_i32, %c0_i32_0 : i32, i32
  }
  func.func @transform_1(%arg0: i32, %arg1: i32) -> (i32, i32, i32) {
    %c0_i32 = arith.constant 0 : i32
    %c0_i32_0 = arith.constant 0 : i32
    return %arg0, %c0_i32, %arg1 : i32, i32, i32
  }
  func.func @transform_2(%arg0: i32, %arg1: i32) -> (i32, i32) {
    %c0_i32 = arith.constant 0 : i32
    %c0_i32_0 = arith.constant 0 : i32
    %c0_i32_1 = arith.constant 0 : i32
    return %c0_i32, %c0_i32_0 : i32, i32
  }
  func.func @transform_3(%arg0: i32, %arg1: i32) -> (i32, i32) {
    %c2_i32 = arith.constant 2 : i32
    %0 = arith.cmpi eq, %arg0, %c2_i32 : i32
    %c0_i32 = arith.constant 0 : i32
    %1 = arith.select %0, %arg1, %c0_i32 : i32
    %c0_i32_0 = arith.constant 0 : i32
    %c0_i32_1 = arith.constant 0 : i32
    return %c0_i32_0, %1 : i32, i32
  }
}

</mosaic_0001>

<llo_original>
// kernel: tpu_custom_call.1
$region0: #{tpu_custom_call.1}
  #allocation0 [shape = 'u32[]', space=smem, size = 0x4, offset = 0x4, fixed_abs, tag = 'smem constant byte address 0x4 - core index']
  #allocation1 [shape = 'u32[72,128]{1,0:T(1,128)}', space=vmem, size = 0x9000, scoped, tag = 'internal scratch']
  #allocation2 [shape = 'bf16[2,8,128]{2,1,0:T(8,128)(2,1)}', space=vmem, size = 0x1000, scoped, tag = 'scratch operand']
  %s0 = inlined_call_operand.hbm [shape: f32[8,128], index: 0, kind: input, shape index: {}]
  %s1 = inlined_call_operand.hbm [shape: bf16[3,128,128], index: 1, kind: input, shape index: {}]
  %s2 = inlined_call_operand.hbm [shape: f32[3,128], index: 2, kind: input, shape index: {}]
  %s3 = inlined_call_operand.hbm [shape: f32[8,128], index: 3, kind: output, shape index: {}]
  %s4 = sld [smem:[#allocation0]]
  $region69: #{tpu_custom_call.1} parent=0
    _
  %s6 = ssub.s32 1, %s4
  %s7 = scalar_select 0, %s6, %s4
  $region1: #{tpu_custom_call.1} parent=0
    #allocation3 [shape = 'u8[4096]{0}', space=vmem, size = 0x1000, scoped, tag = 'input window, operand 0, single buffered']
    #allocation4 [shape = 's32[2]{0}', space=sflag, size = 0x8, scoped, tag = 'scoped memory for tpu_custom_call.1']
    #allocation5 [shape = 's32[2]{0}', space=sflag, size = 0x8, scoped, tag = 'scoped memory for tpu_custom_call.1']
    #allocation6 [shape = 'u8[65536]{0}', space=vmem, size = 0x10000, scoped, tag = 'input window, operand 1']
    #allocation7 [shape = 's32[2]{0}', space=sflag, size = 0x8, scoped, tag = 'scoped memory for tpu_custom_call.1']
    #allocation8 [shape = 'u8[2048]{0}', space=vmem, size = 0x800, scoped, tag = 'input window, operand 2, single buffered']
    #allocation9 [shape = 'u8[8192]{0}', space=vmem, size = 0x2000, scoped, tag = 'output window, operand 0']
    %8 = vsyncpa [#allocation4], 0
    %9 = vsyncpa [#allocation7], 0
    %s10 = scalar_lea.sflag [#allocation7], 1
    %11 = vsyncpa %s10, 0
    %12 = vsyncpa [#allocation5], 0
    %s13 = scalar_lea.sflag [#allocation5], 1
    %14 = vsyncpa %s13, 0
    loop: start=0, step=1, limit=5
    $region2: #{tpu_custom_call.1} parent=1 // loop_pre_header
      _
    $region3: #{tpu_custom_call.1} parent=1 // loop_header
      %s16 = sphi 0, %s20
      %p17 = scmp.ge.s32.totalorder %s16, 5
      %s23 = sphi 0, %s35
      %s24 = sphi 0, %s31
      %s25 = sphi 0, %s23
      %s26 = sphi 0, %s24
      %s27 = sphi 0, %s25
      %s28 = sphi 0, %s26
      %s36 = sphi 0, %s36
      %s38 = sphi 0, %s36
      %s39 = sphi 0, %s38
      %s53 = sphi 0, %s39
      %s61 = sphi 0, %s63
      %s64 = sphi 0, %s61
      %s65 = sphi 0, %s64
      %s81 = sphi 0, %s65
      %s85 = sphi 0, %s85
      %s87 = sphi 0, %s85
      %s88 = sphi 0, %s87
      %s102 = sphi 0, %s88
      %s112 = sphi 0, %s114
      %s115 = sphi 0, %s112
      %s116 = sphi 0, %s115
      %s132 = sphi 0, %s116
    $region4: #{tpu_custom_call.1} parent=1 // loop_header_branch
      %19 = sbr.rel (%p17) target = $region8
    $region5: #{tpu_custom_call.1} parent=1 // loop_body
      %s21 = ssub.s32 %s16, 1
      %s22 = ssub.s32 %s16, 2
      %s29 = sadd.s32 1, %s24
      %p30 = scmp.ge.s32.totalorder %s29, 1
      %s31 = scalar_select %p30, 0, %s29
      %s32 = sadd.s32 1, %s23
      %s33 = scalar_select %p30, %s32, %s23
      %p34 = scmp.ge.s32.totalorder %s33, 3
      %s35 = scalar_select %p34, 0, %s33
      %s37 = sadd.s32 %s36, 1
      %p40 = scmp.eq.s32.totalorder %s16, 2
      %p41 = scmp.ne.s32.totalorder %s36, %s38
      %p42 = scmp.eq.s32.totalorder %s16, 0
      %p43 = por %p41, %p42
      %p44 = scmp.ne.s32.totalorder %s36, %s38
      %p45 = scmp.eq.s32.totalorder %s21, 2
      %p46 = por %p44, %p45
      %p47 = scmp.ne.s32.totalorder %s38, %s39
      %p48 = scmp.eq.s32.totalorder %s21, 0
      %p49 = por %p47, %p48
      %p50 = scmp.ne.s32.totalorder %s38, %s39
      %p51 = scmp.eq.s32.totalorder %s22, 2
      %p52 = por %p50, %p51
      %p54 = scmp.ne.s32.totalorder %s39, %s53
      %p55 = scmp.eq.s32.totalorder %s22, 0
      %p56 = por %p54, %p55
      %s57 = ssub.s32 %s23, %s35
      %s58 = ssub.s32 %s24, %s31
      %s59 = sor.u32 %s57, %s58
      %p60 = scmp.eq.s32.totalorder %s59, 0
      %s62 = sadd.s32 %s61, 1
      %s63 = scalar_select %p60, %s61, %s62
      %p66 = pneg %p60
      %p67 = scmp.eq.s32.totalorder %s16, 2
      %p68 = por %p66, %p67
      %p69 = scmp.ne.s32.totalorder %s61, %s64
      %p70 = scmp.eq.s32.totalorder %s16, 0
      %p71 = por %p69, %p70
      %p72 = scmp.ne.s32.totalorder %s61, %s64
      %p73 = scmp.eq.s32.totalorder %s21, 2
      %p74 = por %p72, %p73
      %p75 = scmp.ne.s32.totalorder %s64, %s65
      %p76 = scmp.eq.s32.totalorder %s21, 0
      %p77 = por %p75, %p76
      %p78 = scmp.ne.s32.totalorder %s64, %s65
      %p79 = scmp.eq.s32.totalorder %s22, 2
      %p80 = por %p78, %p79
      %p82 = scmp.ne.s32.totalorder %s65, %s81
      %p83 = scmp.eq.s32.totalorder %s22, 0
      %p84 = por %p82, %p83
      %s86 = sadd.s32 %s85, 1
      %p89 = scmp.eq.s32.totalorder %s16, 2
      %p90 = scmp.ne.s32.totalorder %s85, %s87
      %p91 = scmp.eq.s32.totalorder %s16, 0
      %p92 = por %p90, %p91
      %p93 = scmp.ne.s32.totalorder %s85, %s87
      %p94 = scmp.eq.s32.totalorder %s21, 2
      %p95 = por %p93, %p94
      %p96 = scmp.ne.s32.totalorder %s87, %s88
      %p97 = scmp.eq.s32.totalorder %s21, 0
      %p98 = por %p96, %p97
      %p99 = scmp.ne.s32.totalorder %s87, %s88
      %p100 = scmp.eq.s32.totalorder %s22, 2
      %p101 = por %p99, %p100
      %p103 = scmp.ne.s32.totalorder %s88, %s102
      %p104 = scmp.eq.s32.totalorder %s22, 0
      %p105 = por %p103, %p104
      %p106 = scmp.eq.s32.totalorder %s23, 2
      %s107 = scalar_select %p106, %s24, 0
      %p108 = scmp.eq.s32.totalorder %s35, 2
      %s109 = scalar_select %p108, %s31, 0
      %s110 = ssub.s32 %s107, %s109
      %p111 = scmp.eq.s32.totalorder %s110, 0
      %s113 = sadd.s32 %s112, 1
      %s114 = scalar_select %p111, %s112, %s113
      %p117 = pneg %p111
      %p118 = scmp.eq.s32.totalorder %s16, 2
      %p119 = por %p117, %p118
      %p120 = scmp.ne.s32.totalorder %s112, %s115
      %p121 = scmp.eq.s32.totalorder %s16, 0
      %p122 = por %p120, %p121
      %p123 = scmp.ne.s32.totalorder %s112, %s115
      %p124 = scmp.eq.s32.totalorder %s21, 2
      %p125 = por %p123, %p124
      %p126 = scmp.ne.s32.totalorder %s115, %s116
      %p127 = scmp.eq.s32.totalorder %s21, 0
      %p128 = por %p126, %p127
      %p129 = scmp.ne.s32.totalorder %s115, %s116
      %p130 = scmp.eq.s32.totalorder %s22, 2
      %p131 = por %p129, %p130
      %p133 = scmp.ne.s32.totalorder %s116, %s132
      %p134 = scmp.eq.s32.totalorder %s22, 0
      %p135 = por %p133, %p134
      %p136 = scmp.le.s32.totalorder 1, %s16
      %p137 = scmp.lt.s32.totalorder %s16, 4
      %p138 = pnand %p136, %p137
      %p139 = pneg %p138
      // Predicated region
      $region9: #{tpu_custom_call.1} parent=5 // pred_check
        _
      $region10: #{tpu_custom_call.1} parent=5 // pred_check_branch
        %141 = sbr.rel (%p138) target = $region12
      $region11: #{tpu_custom_call.1} parent=5 // pred_region
        %s142 = ssub.s32 %s16, 1
        // Predicated region
        $region13: #{tpu_custom_call.1} parent=11 // pred_check
          %p143 = pneg %p49
        $region14: #{tpu_custom_call.1} parent=11 // pred_check_branch
          %145 = sbr.rel (%p143) target = $region16
        $region15: #{tpu_custom_call.1} parent=11 // pred_region
          %147 = vsyncadd [#allocation4], 0
          %s149 = sshll.u32 %s0, 4
          %s150 = int_to_ptr.hbm [resolvable:$true] %s149
          %s151 = sshll.u32 [#allocation3], 4
          %s152 = int_to_ptr.vmem [resolvable:$true] %s151
          %154 = dma.hbm_to_vmem [thread:$0]  %s150, 128, %s152, [#allocation4]
        $region16: #{tpu_custom_call.1} parent=11 // pred_fallthru
          _
        // Predicated region
        $region17: #{tpu_custom_call.1} parent=11 // pred_check
          %p155 = pneg %p98
        $region18: #{tpu_custom_call.1} parent=11 // pred_check_branch
          %157 = sbr.rel (%p155) target = $region20
        $region19: #{tpu_custom_call.1} parent=11 // pred_region
          %159 = vsyncadd [#allocation7], 0
          %s161 = sshll.u32 %s2, 4
          %s162 = int_to_ptr.hbm [resolvable:$true] %s161
          %s163 = sshll.u32 [#allocation8], 4
          %s164 = int_to_ptr.vmem [resolvable:$true] %s163
          %166 = dma.hbm_to_vmem [thread:$0]  %s162, 64, %s164, [#allocation7]
        $region20: #{tpu_custom_call.1} parent=11 // pred_fallthru
          _
      $region12: #{tpu_custom_call.1} parent=5 // pred_fallthru
        _
      %p167 = scmp.lt.s32.totalorder %s16, 3
      // Predicated region
      $region21: #{tpu_custom_call.1} parent=5 // pred_check
        %p168 = pneg %p167
      $region22: #{tpu_custom_call.1} parent=5 // pred_check_branch
        %170 = sbr.rel (%p168) target = $region24
      $region23: #{tpu_custom_call.1} parent=5 // pred_region
        // Predicated region
        $region25: #{tpu_custom_call.1} parent=23 // pred_check
          %p171 = pneg %p71
        $region26: #{tpu_custom_call.1} parent=23 // pred_check_branch
          %173 = sbr.rel (%p171) target = $region28
        $region27: #{tpu_custom_call.1} parent=23 // pred_region
          %s174 = sand.u32 %s16, 1
          %s175 = scalar_lea.sflag [#allocation7], %s174
          %s176 = sand.u32 %s61, 1
          %s177 = smul.addr %s176, 64
          %s178 = scalar_lea.vmem [#allocation6], %s177
          %180 = vsyncadd %s175, 0
          %s181 = smul.addr %s23, 16
          %s182 = sadd.s32 %s24, %s181
          %s183 = smul.addr %s182, 4
          %s184 = scalar_lea.hbm %s1, %s183
          %s185 = sshll.u32 %s184, 4
          %s186 = int_to_ptr.hbm [resolvable:$true] %s185
          %s187 = sshll.u32 %s178, 4
          %s188 = int_to_ptr.vmem [resolvable:$true] %s187
          %193 = dma.hbm_to_vmem [thread:$0]  %s186, 1024, %s188, %s175, 64, 64, 4
        $region28: #{tpu_custom_call.1} parent=23 // pred_fallthru
          _
      $region24: #{tpu_custom_call.1} parent=5 // pred_fallthru
        _
      %p194 = scmp.le.s32.totalorder 1, %s16
      %p195 = scmp.lt.s32.totalorder %s16, 4
      %p196 = pnand %p194, %p195
      %p197 = pneg %p196
      // Predicated region
      $region29: #{tpu_custom_call.1} parent=5 // pred_check
        _
      $region30: #{tpu_custom_call.1} parent=5 // pred_check_branch
        %199 = sbr.rel (%p196) target = $region32
      $region31: #{tpu_custom_call.1} parent=5 // pred_region
        %s200 = ssub.s32 %s16, 1
        // Predicated region
        $region33: #{tpu_custom_call.1} parent=31 // pred_check
          %p201 = pneg %p49
        $region34: #{tpu_custom_call.1} parent=31 // pred_check_branch
          %203 = sbr.rel (%p201) target = $region36
        $region35: #{tpu_custom_call.1} parent=31 // pred_region
          %205 = dma.done [#allocation4], 128
        $region36: #{tpu_custom_call.1} parent=31 // pred_fallthru
          _
        %s206 = sand.u32 %s21, 1
        %s207 = scalar_lea.sflag [#allocation7], %s206
        %s208 = sand.u32 %s64, 1
        %s209 = smul.addr %s208, 64
        %s210 = scalar_lea.vmem [#allocation6], %s209
        // Predicated region
        $region37: #{tpu_custom_call.1} parent=31 // pred_check
          %p211 = pneg %p77
        $region38: #{tpu_custom_call.1} parent=31 // pred_check_branch
          %213 = sbr.rel (%p211) target = $region40
        $region39: #{tpu_custom_call.1} parent=31 // pred_region
          %215 = dma.done %s207, 1024
        $region40: #{tpu_custom_call.1} parent=31 // pred_fallthru
          _
        // Predicated region
        $region41: #{tpu_custom_call.1} parent=31 // pred_check
          %p216 = pneg %p98
        $region42: #{tpu_custom_call.1} parent=31 // pred_check_branch
          %218 = sbr.rel (%p216) target = $region44
        $region43: #{tpu_custom_call.1} parent=31 // pred_region
          %220 = dma.done [#allocation7], 64
        $region44: #{tpu_custom_call.1} parent=31 // pred_fallthru
          _
        %p221 = pneg %p49
        %p222 = pneg %p46
        %s223 = sand.u32 %s21, 1
        %s224 = scalar_lea.sflag [#allocation7], %s223
        %s225 = sand.u32 %s64, 1
        %s226 = smul.addr %s225, 64
        %s227 = scalar_lea.vmem [#allocation6], %s226
        %p228 = pneg %p77
        %p229 = pneg %p74
        %p230 = pneg %p98
        %p231 = pneg %p95
        %p232 = pneg %p128
        %p233 = pneg %p125
        %s234 = sand.u32 %s115, 1
        %s235 = scalar_lea.sflag [#allocation5], %s234
        %s236 = sand.u32 %s115, 1
        %s237 = smul.addr %s236, 8
        %s238 = scalar_lea.vmem [#allocation9], %s237
        %p239 = scmp.eq.s32.totalorder %s25, 2
        %s240 = scalar_select %p239, %s26, 0
        %p241 = scmp.eq.s32.totalorder %s25, 0
        %p242 = scmp.eq.s32.totalorder %s26, 0
        %p243 = pnand %p241, %p242
        %p244 = pneg %p243
        // Predicated region
        $region45: #{tpu_custom_call.1} parent=31 // pred_check
          _
        $region46: #{tpu_custom_call.1} parent=31 // pred_check_branch
          %246 = sbr.rel (%p243) target = $region48
        $region47: #{tpu_custom_call.1} parent=31 // pred_region
          %v247 = vld [vmem:[#allocation3] sm:$0xff]
          %v248 = vpack.c.bf16 %v247, %v247
          %249 = vst [vmem:[#allocation2] sm:$0xf] %v248
        $region48: #{tpu_custom_call.1} parent=31 // pred_fallthru
          _
        %p250 = scmp.lt.s32.totalorder %s25, 0
        %s251 = ssub.s32 0, %s25
        %s252 = scalar_select %p250, %s251, %s25
        %s253 = sand.u32 %s252, 1
        %s254 = ssub.s32 0, %s253
        %s255 = scalar_select %p250, %s254, %s253
        %p256 = scmp.ne.s32.totalorder %s255, 0
        %p257 = scmp.lt.s32.totalorder %s255, 0
        %p258 = pnand %p257, %p256
        %p259 = pneg %p258
        %s260 = sadd.s32 %s255, 2
        %s261 = scalar_select %p259, %s260, %s255
        %s262 = sadd.s32 %s25, 1
        %p263 = scmp.lt.s32.totalorder %s262, 0
        %s264 = ssub.s32 0, %s262
        %s265 = scalar_select %p263, %s264, %s262
        %s266 = sand.u32 %s265, 1
        %s267 = ssub.s32 0, %s266
        %s268 = scalar_select %p263, %s267, %s266
        %p269 = scmp.ne.s32.totalorder %s268, 0
        %p270 = scmp.lt.s32.totalorder %s268, 0
        %p271 = pnand %p270, %p269
        %p272 = pneg %p271
        %s273 = sadd.s32 %s268, 2
        %s274 = scalar_select %p272, %s273, %s268
        %s275 = smul.u32 %s26, 128
        %v276 = vld [vmem:[%s210] sm:$0xf]
        %v277 = vld [vmem:[%s210 + $0x4] sm:$0xf]
        %v278 = vld [vmem:[%s210 + $0x8] sm:$0xf]
        %v279 = vld [vmem:[%s210 + $0xc] sm:$0xf]
        %v280 = vld [vmem:[%s210 + $0x10] sm:$0xf]
        %v281 = vld [vmem:[%s210 + $0x14] sm:$0xf]
        %v282 = vld [vmem:[%s210 + $0x18] sm:$0xf]
        %v283 = vld [vmem:[%s210 + $0x1c] sm:$0xf]
        %v284 = vld [vmem:[%s210 + $0x20] sm:$0xf]
        %v285 = vld [vmem:[%s210 + $0x24] sm:$0xf]
        %v286 = vld [vmem:[%s210 + $0x28] sm:$0xf]
        %v287 = vld [vmem:[%s210 + $0x2c] sm:$0xf]
        %v288 = vld [vmem:[%s210 + $0x30] sm:$0xf]
        %v289 = vld [vmem:[%s210 + $0x34] sm:$0xf]
        %v290 = vld [vmem:[%s210 + $0x38] sm:$0xf]
        %v291 = vld [vmem:[%s210 + $0x3c] sm:$0xf]
        %s292 = smul.addr %s261, 4
        %s293 = scalar_lea.vmem [#allocation2], %s292
        %v294 = vld [vmem:[%s293] sm:$0xf]
        %s295 = sshra.s32 %s275, 7
        %s296 = sand.u32 %s275, 127
        %s297 = sadd.s32 %s295, %s25
        %s298 = scalar_lea.vmem [#allocation8], %s297
        %v299 = vld [vmem:[%s298] sm:$0x1]
        %v300 = vperm.slane %v299, 0
        %v317 = vunpack.c.l.b16 %v276
        %v318 = vunpack.c.l.b16 %v277
        %v319 = vunpack.c.l.b16 %v278
        %v320 = vunpack.c.l.b16 %v279
        %v321 = vunpack.c.l.b16 %v280
        %v322 = vunpack.c.l.b16 %v281
        %v323 = vunpack.c.l.b16 %v282
        %v324 = vunpack.c.l.b16 %v283
        %v325 = vunpack.c.l.b16 %v284
        %v326 = vunpack.c.l.b16 %v285
        %v327 = vunpack.c.l.b16 %v286
        %v328 = vunpack.c.l.b16 %v287
        %v329 = vunpack.c.l.b16 %v288
        %v330 = vunpack.c.l.b16 %v289
        %v331 = vunpack.c.l.b16 %v290
        %v332 = vunpack.c.l.b16 %v291
        %v333 = vpack.c.b16 %v318, %v317
        %v334 = vpack.c.b16 %v320, %v319
        %v335 = vpack.c.b16 %v322, %v321
        %v336 = vpack.c.b16 %v324, %v323
        %v337 = vpack.c.b16 %v326, %v325
        %v338 = vpack.c.b16 %v328, %v327
        %v339 = vpack.c.b16 %v330, %v329
        %v340 = vpack.c.b16 %v332, %v331
        %349 = vmatpush.bf16.msra.mxu0 %v340
        %350 = vmatpush.bf16.msra.mxu0 %v339
        %351 = vmatpush.bf16.msra.mxu0 %v338
        %352 = vmatpush.bf16.msra.mxu0 %v337
        %353 = vmatpush.bf16.msra.mxu0 %v336
        %354 = vmatpush.bf16.msra.mxu0 %v335
        %355 = vmatpush.bf16.msra.mxu0 %v334
        %356 = vmatpush.bf16.msra.mxu0 %v333
        %357 = vmatmul.bf16.gmra.mxu0 %v294
        %v358 = vpop.f32.mrf.mxu0
        %v359 = vadd.f32 %v300, %v358
        %v360 = vpop.f32.mrf.mxu0
        %361 = vdwg.mxu0
        %v362 = vmul.f32 %v359, 0.5
        %v363 = vmul.f32 %v359, 0.70710677
        %v364 = vmul.f32 %v363, %v363
        %v365 = vmin.f32 16.0, %v364
        %v366 = vmul.f32 %v365, 2.1237322e-06
        %v367 = vadd.f32 %v366, 0.00028619796
        %v368 = vmul.f32 %v365, %v367
        %v369 = vadd.f32 %v368, 0.0036580483
        %v370 = vmul.f32 %v365, %v369
        %v371 = vadd.f32 %v370, 0.05243302
        %v372 = vmul.f32 %v365, %v371
        %v373 = vadd.f32 %v372, 0.18741608
        %v374 = vmul.f32 %v365, %v373
        %v375 = vadd.f32 %v374, 1.1283791
        %v376 = vmul.f32 %v363, %v375
        %v377 = vmul.f32 %v365, 3.8918573e-05
        %v378 = vadd.f32 %v377, 0.001143296
        %v379 = vmul.f32 %v365, %v378
        %v380 = vadd.f32 %v379, 0.014752088
        %v381 = vmul.f32 %v365, %v380
        %v382 = vadd.f32 %v381, 0.112945676
        %v383 = vmul.f32 %v365, %v382
        %v384 = vadd.f32 %v383, 0.4994258
        %v385 = vmul.f32 %v365, %v384
        %v386 = vadd.f32 %v385, 1.0
        %v387 = vrcp.pop %v386
        %v388 = vmul.f32 %v386, %v387
        %v389 = vsub.f32 1.0, %v388
        %v390 = vmul.f32 %v387, %v389
        %v391 = vadd.f32 %v387, %v390
        %vm392 = vweird.f32 %v386
        %vm393 = vweird.f32 %v387
        %vm394 = vmor %vm392, %vm393
        %v395 = vsel %vm394, %v387, %v391
        %v396 = vand.u32 2147483647, %v386
        %vm397 = vcmp.eq.f32.partialorder %v396, 8.507059e+37
        %v398 = vand.u32 %v386, 2147483648
        %v399 = vor.u32 1.1754944e-38, %v398
        %v400 = vsel %vm397, %v399, %v395
        %v401 = vmul.f32 %v376, %v400
        %v402 = vmin.f32 %v401, 1.0
        %v403 = vmax.f32 %v402, -1.0
        %v404 = vadd.f32 %v403, 1.0
        %v405 = vmul.f32 %v362, %v404
        %p406 = scmp.lt.s32.totalorder %s25, 2
        // Predicated region
        $region49: #{tpu_custom_call.1} parent=31 // pred_check
          %p407 = pneg %p406
        $region50: #{tpu_custom_call.1} parent=31 // pred_check_branch
          %409 = sbr.rel (%p407) target = $region52
        $region51: #{tpu_custom_call.1} parent=31 // pred_region
          %v410 = vpack.c.bf16 %v405, %v405
          %s411 = sadd.s32 %s295, %s274
          %s412 = smul.addr %s411, 4
          %s413 = scalar_lea.vmem [#allocation2], %s412
          %414 = vst [vmem:[%s413] sm:$0xf] %v410
        $region52: #{tpu_custom_call.1} parent=31 // pred_fallthru
          _
        %p415 = scmp.eq.s32.totalorder %s25, 2
        // Predicated region
        $region53: #{tpu_custom_call.1} parent=31 // pred_check
          %p416 = pneg %p415
        $region54: #{tpu_custom_call.1} parent=31 // pred_check_branch
          %418 = sbr.rel (%p416) target = $region56
        $region55: #{tpu_custom_call.1} parent=31 // pred_region
          %419 = vst [vmem:[%s238] sm:$0xff] %v405
        $region56: #{tpu_custom_call.1} parent=31 // pred_fallthru
          _
        %s420 = sand.u32 %s115, 1
        %s421 = scalar_lea.sflag [#allocation5], %s420
        %s422 = sand.u32 %s115, 1
        %s423 = smul.addr %s422, 8
        %s424 = scalar_lea.vmem [#allocation9], %s423
        // Predicated region
        $region57: #{tpu_custom_call.1} parent=31 // pred_check
          %p425 = pneg %p125
        $region58: #{tpu_custom_call.1} parent=31 // pred_check_branch
          %427 = sbr.rel (%p425) target = $region60
        $region59: #{tpu_custom_call.1} parent=31 // pred_region
          %p428 = scmp.eq.s32.totalorder %s25, 2
          %s429 = scalar_select %p428, %s26, 0
          %431 = vsyncadd %s421, 0
          %s432 = smul.addr %s429, 8
          %s433 = scalar_lea.hbm %s3, %s432
          %s435 = sshll.u32 %s424, 4
          %s436 = int_to_ptr.vmem [resolvable:$true] %s435
          %s437 = sshll.u32 %s433, 4
          %s438 = int_to_ptr.hbm [resolvable:$true] %s437
          %440 = dma.vmem_to_hbm [thread:$0]  %s436, 128, %s438, %s421
        $region60: #{tpu_custom_call.1} parent=31 // pred_fallthru
          _
      $region32: #{tpu_custom_call.1} parent=5 // pred_fallthru
        _
      %p441 = scmp.le.s32.totalorder 2, %s16
      // Predicated region
      $region61: #{tpu_custom_call.1} parent=5 // pred_check
        %p442 = pneg %p441
      $region62: #{tpu_custom_call.1} parent=5 // pred_check_branch
        %444 = sbr.rel (%p442) target = $region64
      $region63: #{tpu_custom_call.1} parent=5 // pred_region
        %s445 = ssub.s32 %s16, 2
        // Predicated region
        $region65: #{tpu_custom_call.1} parent=63 // pred_check
          %p446 = pneg %p131
        $region66: #{tpu_custom_call.1} parent=63 // pred_check_branch
          %448 = sbr.rel (%p446) target = $region68
        $region67: #{tpu_custom_call.1} parent=63 // pred_region
          %s449 = sand.u32 %s116, 1
          %s450 = scalar_lea.sflag [#allocation5], %s449
          %s451 = sand.u32 %s116, 1
          %s452 = smul.addr %s451, 8
          %s453 = scalar_lea.vmem [#allocation9], %s452
          %455 = dma.done %s450, 128
        $region68: #{tpu_custom_call.1} parent=63 // pred_fallthru
          _
      $region64: #{tpu_custom_call.1} parent=5 // pred_fallthru
        _
    $region6: #{tpu_custom_call.1} parent=1 // loop_footer
      %s20 = sadd.s32 1, %s16
    $region7: #{tpu_custom_call.1} parent=1 // loop_footer_branch
      %15 = sbr.rel target = $region3
    $region8: #{tpu_custom_call.1} parent=1 // loop_exit
      _
    %456 = vsyncpa [#allocation4], 1
    %s457 = scalar_lea.sflag [#allocation4], 1
    %458 = vsyncpa %s457, 1
    %459 = vsyncpa [#allocation7], 1
    %s460 = scalar_lea.sflag [#allocation7], 1
    %461 = vsyncpa %s460, 1
    %462 = vsyncpa [#allocation5], 1
    %s463 = scalar_lea.sflag [#allocation5], 1
    %464 = vsyncpa %s463, 1

</llo_original>
